<compile_context>
chip_gen: v7x
topology: tpu7x:2x2x1
jax: 0.10.0
libtpu: 0.0.40
codegen_flags: <defaults>
</compile_context>

<pallas_src>
import functools
import math

import jax
import jax.numpy as jnp
import numpy as np
from jax import lax
from jax.experimental import pallas as pl
from jax.experimental.pallas import tpu as pltpu


def _cdiv(a, b):
    return -(-a // b)


def _round_up(a, b):
    return -(-a // b) * b


def _gmapping_kernel(x_ref, w_ref, b_ref, o_ref, *,
                     num_layers, normalize_latents, eps, neg_slope):
    """Fused PixelNorm + L x (EqualizedLinear -> activation).

    x_ref: (TB, D)      batch tile of latents Z (f32)
    w_ref: (L, D, D)    stacked weights, (in, out) per layer, bf16,
                        equalized-LR multiplier already folded in
    b_ref: (L, D)       stacked biases, f32, lrmul already folded in
    o_ref: (TB, D)      batch tile of dlatents W
    """
    h = x_ref[...].astype(jnp.float32)

    if normalize_latents:
        # PixelNormLayer: x * rsqrt(mean(x^2, dim=1) + eps)  (EUP rsqrt, no div)
        ms = jnp.mean(h * h, axis=-1, keepdims=True)
        h = h * lax.rsqrt(ms + eps)

    b_all = b_ref[...]                                       # (L, D) f32, tiny

    for l in range(num_layers):                              # static unroll over layers
        # Single MXU push per layer: bf16 x bf16 -> f32 accumulate.
        y = jnp.dot(h.astype(jnp.bfloat16), w_ref[l],
                    preferred_element_type=jnp.float32)
        y = y + b_all[l][None, :]
        # relu (neg_slope=0.0) / leaky-relu (neg_slope=0.2)
        h = jnp.where(y > 0, y, neg_slope * y)

    o_ref[...] = h.astype(o_ref.dtype)


def gmapping_forward(x, weights, biases, *,
                     mapping_lrmul=0.01,
                     mapping_nonlinearity='lrelu',
                     use_wscale=True,
                     normalize_latents=True,
                     dlatent_broadcast=None,
                     eps=1e-8,
                     out_dtype=None):
    """GMapping.forward.  `weights[l]` is PyTorch layout (out_dim, in_dim)."""
    num_layers = len(weights)
    N, latent = x.shape
    gain = math.sqrt(2.0)
    neg_slope = {'relu': 0.0, 'lrelu': 0.2}[mapping_nonlinearity]
    out_dtype = x.dtype if out_dtype is None else jnp.dtype(out_dtype)

    dims_in = [w.shape[1] for w in weights]
    dims_out = [w.shape[0] for w in weights]
    assert dims_in[0] == latent
    D = dims_in[0]
    # TODO(synk): unequal layer widths (latent != fmaps != dlatent) would need
    #             per-layer zero-padding of the stacked weight tensor; default
    #             GMapping uses equal widths everywhere.
    assert all(d == D for d in dims_in + dims_out), "stacked path needs equal widths"

    # One-time layout prep in the glue:
    #  (out, in) -> (in, out), equalized-LR multiplier folded in, bf16 for MXU.
    #  lrmul folded into the (tiny) f32 bias stack.
    w_list, b_list = [], []
    for W, b, din in zip(weights, biases, dims_in):
        he_std = gain * din ** (-0.5)
        w_mul = he_std * mapping_lrmul if use_wscale else mapping_lrmul
        w_list.append((jnp.transpose(W) * w_mul).astype(jnp.bfloat16))
        b_list.append((b * mapping_lrmul).astype(jnp.float32))
    w_stacked = jnp.stack(w_list, axis=0)                    # (L, D, D) bf16
    b_stacked = jnp.stack(b_list, axis=0)                    # (L, D)    f32

    # Batch tiling: large 8-row-aligned tiles for HBM roofline, but keep the
    # "parallel" grid >= 2 steps whenever N allows (v7x has 2 TensorCores).
    TB = max(8, min(1024, _round_up(_cdiv(N, 2), 8)))
    grid = _cdiv(N, TB)   # no pad: Pallas masks writeback of the partial last block

    kernel = functools.partial(
        _gmapping_kernel,
        num_layers=num_layers, normalize_latents=normalize_latents,
        eps=eps, neg_slope=neg_slope)

    # Honest VMEM budget: double-buffered batch tiles, resident weights/bias,
    # plus headroom for in-kernel f32 temporaries.  Clamped under v7x's 64 MiB.
    out_itemsize = jnp.dtype(out_dtype).itemsize
    vmem_bytes = (2 * TB * D * x.dtype.itemsize       # x tiles (double-buffered)
                  + 2 * TB * D * out_itemsize         # out tiles (double-buffered)
                  + 2 * num_layers * D * D * 2        # bf16 weight stack
                  + 2 * num_layers * D * 4            # f32 bias stack
                  + 8 * TB * D * 4)                   # h / y / cast temporaries
    vmem_limit = int(min(max(vmem_bytes + (2 << 20), 16 << 20), 48 << 20))

    out = pl.pallas_call(
        kernel,
        out_shape=jax.ShapeDtypeStruct((N, D), out_dtype),
        grid_spec=pltpu.PrefetchScalarGridSpec(
            num_scalar_prefetch=0,
            grid=(grid,),
            in_specs=[
                pl.BlockSpec((TB, D), lambda i: (i, 0)),
                pl.BlockSpec((num_layers, D, D), lambda i: (0, 0, 0)),  # resident
                pl.BlockSpec((num_layers, D), lambda i: (0, 0)),        # resident
            ],
            out_specs=pl.BlockSpec((TB, D), lambda i: (i, 0)),
        ),
        compiler_params=pltpu.CompilerParams(
            dimension_semantics=("parallel",),
            vmem_limit_bytes=vmem_limit),
    )(x, w_stacked, b_stacked)

    if dlatent_broadcast is not None:
        # x.unsqueeze(1).expand(-1, B, -1): pure broadcast view, done in the glue.
        out = jnp.broadcast_to(out[:, None, :], (N, dlatent_broadcast, D))
    return out


def _ref_forward(x, weights, biases, *, mapping_lrmul, mapping_nonlinearity,
                 use_wscale, normalize_latents, dlatent_broadcast, eps=1e-8,
                 matmul_dtype=None):
    """Pure-JAX reference matching the PyTorch GMapping semantics.

    matmul_dtype=None      -> full f32 reference (module semantics)
    matmul_dtype=bfloat16  -> mirrors the kernel's bf16 MXU operands
    """
    gain = math.sqrt(2.0)
    neg_slope = {'relu': 0.0, 'lrelu': 0.2}[mapping_nonlinearity]
    h = x
    if normalize_latents:
        h = h * lax.rsqrt(jnp.mean(h * h, axis=1, keepdims=True) + eps)
    for W, b in zip(weights, biases):
        he_std = gain * W.shape[1] ** (-0.5)
        w_mul = he_std * mapping_lrmul if use_wscale else mapping_lrmul
        Wt = (W * w_mul).T
        if matmul_dtype is None:
            y = jnp.dot(h, Wt, precision=lax.Precision.HIGHEST)
        else:
            y = jnp.dot(h.astype(matmul_dtype), Wt.astype(matmul_dtype),
                        preferred_element_type=jnp.float32)
        y = y + b * mapping_lrmul
        h = jnp.where(y > 0, y, neg_slope * y)
    if dlatent_broadcast is not None:
        h = jnp.broadcast_to(h[:, None, :], (h.shape[0], dlatent_broadcast, h.shape[1]))
    return h


if __name__ == "__main__":
    key = jax.random.PRNGKey(0)
    N = 16                        # minibatch (grid of 2 tiles -> exercises parallel axis)
    latent = fmaps = dlatent = 128
    L = 8                         # mapping_layers
    lrmul = 0.01

    keys = jax.random.split(key, 2 * L + 1)
    x = jax.random.normal(keys[0], (N, latent), jnp.float32)

    init_std = 1.0 / lrmul        # use_wscale=True -> weight init std = 1/lrmul
    weights = [init_std * jax.random.normal(keys[1 + l], (fmaps, fmaps), jnp.float32)
               for l in range(L)]
    biases = [0.5 * jax.random.normal(keys[1 + L + l], (fmaps,), jnp.float32)
              for l in range(L)]

    configs = [
        dict(mapping_nonlinearity='lrelu', normalize_latents=True,
             dlatent_broadcast=None),                       # GMapping defaults
        dict(mapping_nonlinearity='relu', normalize_latents=False,
             dlatent_broadcast=6),                          # broadcast + relu path
    ]
    for cfg in configs:
        out = gmapping_forward(x, weights, biases, mapping_lrmul=lrmul,
                               use_wscale=True, **cfg)
        out = jax.block_until_ready(out)

        # Primary check: reference with the same bf16 MXU-operand precision.
        ref_bf16 = _ref_forward(x, weights, biases, mapping_lrmul=lrmul,
                                use_wscale=True, matmul_dtype=jnp.bfloat16, **cfg)
        np.testing.assert_allclose(np.asarray(out), np.asarray(ref_bf16),
                                   rtol=2e-3, atol=2e-3)

        # Loose sanity check vs the full-f32 module semantics (bf16 operands are
        # a precision tradeoff over the 8-layer chain, not a bug).
        ref_f32 = _ref_forward(x, weights, biases, mapping_lrmul=lrmul,
                               use_wscale=True, matmul_dtype=None, **cfg)
        np.testing.assert_allclose(np.asarray(out), np.asarray(ref_f32),
                                   rtol=2e-1, atol=1e-1)

    print("KERNEL_OK")
</pallas_src>

<mosaic_0001>
module attributes {stable_mosaic.version = 11 : i64} {
  func.func @_gmapping_kernel(%arg0: i32, %arg1: memref<8x128xf32, #tpu.memory_space<vmem>>, %arg2: memref<8x128x128xbf16, #tpu.memory_space<vmem>>, %arg3: memref<8x128xf32, #tpu.memory_space<vmem>>, %arg4: memref<8x128xf32, #tpu.memory_space<vmem>>) attributes {dimension_semantics = [#tpu.dimension_semantics<parallel>], iteration_bounds = array<i64: 2>, scalar_prefetch = 0 : i64, scratch_operands = 0 : i64, tpu.core_type = #tpu.core_type<tc>, window_params = [{transform_indices = @transform_0, window_bounds = array<i64: 8, 128>}, {pipeline_mode = #tpu.pipeline_mode<synchronous>, transform_indices = @transform_1, window_bounds = array<i64: 8, 128, 128>}, {pipeline_mode = #tpu.pipeline_mode<synchronous>, transform_indices = @transform_2, window_bounds = array<i64: 8, 128>}, {transform_indices = @transform_3, window_bounds = array<i64: 8, 128>}]} {
    %c0 = arith.constant 0 : index
    %c0_0 = arith.constant 0 : index
    %0 = vector.load %arg1[%c0, %c0_0] : memref<8x128xf32, #tpu.memory_space<vmem>>, vector<8x128xf32>
    %1 = arith.mulf %0, %0 : vector<8x128xf32>
    %cst = arith.constant dense<0.000000e+00> : vector<8xf32>
    %2 = vector.multi_reduction <add>, %1, %cst [1] : vector<8x128xf32> to vector<8xf32>
    %3 = vector.shape_cast %2 : vector<8xf32> to vector<8x1xf32>
    %cst_1 = arith.constant 1.280000e+02 : f32
    %4 = vector.broadcast %cst_1 : f32 to vector<8x1xf32>
    %5 = arith.divf %3, %4 : vector<8x1xf32>
    %cst_2 = arith.constant 9.99999993E-9 : f32
    %6 = vector.broadcast %cst_2 : f32 to vector<8x1xf32>
    %7 = arith.addf %5, %6 : vector<8x1xf32>
    %8 = math.rsqrt %7 : vector<8x1xf32>
    %9 = vector.broadcast %8 : vector<8x1xf32> to vector<8x128xf32>
    %10 = arith.mulf %0, %9 : vector<8x128xf32>
    %c0_3 = arith.constant 0 : index
    %c0_4 = arith.constant 0 : index
    %11 = vector.load %arg3[%c0_3, %c0_4] : memref<8x128xf32, #tpu.memory_space<vmem>>, vector<8x128xf32>
    %12 = arith.truncf %10 : vector<8x128xf32> to vector<8x128xbf16>
    %c0_5 = arith.constant 0 : index
    %c0_6 = arith.constant 0 : index
    %c0_7 = arith.constant 0 : index
    %13 = vector.load %arg2[%c0_5, %c0_6, %c0_7] : memref<8x128x128xbf16, #tpu.memory_space<vmem>>, vector<1x128x128xbf16>
    %14 = vector.shape_cast %13 : vector<1x128x128xbf16> to vector<128x128xbf16>
    %cst_8 = arith.constant dense<0.000000e+00> : vector<8x128xf32>
    %15 = tpu.matmul %12, %14, %cst_8 {dimension_numbers = #tpu.dot_dimension_numbers<[1], [0], [0], [1], [0, 0, 1, 1], [], []>} : vector<8x128xbf16>, vector<128x128xbf16>, vector<8x128xf32> -> vector<8x128xf32>
    %16 = vector.extract_strided_slice %11 {offsets = [0, 0], sizes = [1, 128], strides = [1, 1]} : vector<8x128xf32> to vector<1x128xf32>
    %17 = vector.shape_cast %16 : vector<1x128xf32> to vector<128xf32>
    %18 = vector.shape_cast %17 : vector<128xf32> to vector<1x128xf32>
    %19 = vector.broadcast %18 : vector<1x128xf32> to vector<8x128xf32>
    %20 = arith.addf %15, %19 : vector<8x128xf32>
    %cst_9 = arith.constant 0.000000e+00 : f32
    %21 = vector.broadcast %cst_9 : f32 to vector<8x128xf32>
    %22 = arith.cmpf ogt, %20, %21 : vector<8x128xf32>
    %cst_10 = arith.constant 2.000000e-01 : f32
    %23 = vector.broadcast %cst_10 : f32 to vector<8x128xf32>
    %24 = arith.mulf %23, %20 : vector<8x128xf32>
    %25 = arith.select %22, %20, %24 : vector<8x128xi1>, vector<8x128xf32>
    %26 = arith.truncf %25 : vector<8x128xf32> to vector<8x128xbf16>
    %c1 = arith.constant 1 : index
    %c0_11 = arith.constant 0 : index
    %c0_12 = arith.constant 0 : index
    %27 = vector.load %arg2[%c1, %c0_11, %c0_12] : memref<8x128x128xbf16, #tpu.memory_space<vmem>>, vector<1x128x128xbf16>
    %28 = vector.shape_cast %27 : vector<1x128x128xbf16> to vector<128x128xbf16>
    %cst_13 = arith.constant dense<0.000000e+00> : vector<8x128xf32>
    %29 = tpu.matmul %26, %28, %cst_13 {dimension_numbers = #tpu.dot_dimension_numbers<[1], [0], [0], [1], [0, 0, 1, 1], [], []>} : vector<8x128xbf16>, vector<128x128xbf16>, vector<8x128xf32> -> vector<8x128xf32>
    %30 = vector.extract_strided_slice %11 {offsets = [1, 0], sizes = [1, 128], strides = [1, 1]} : vector<8x128xf32> to vector<1x128xf32>
    %31 = vector.shape_cast %30 : vector<1x128xf32> to vector<128xf32>
    %32 = vector.shape_cast %31 : vector<128xf32> to vector<1x128xf32>
    %33 = vector.broadcast %32 : vector<1x128xf32> to vector<8x128xf32>
    %34 = arith.addf %29, %33 : vector<8x128xf32>
    %cst_14 = arith.constant 0.000000e+00 : f32
    %35 = vector.broadcast %cst_14 : f32 to vector<8x128xf32>
    %36 = arith.cmpf ogt, %34, %35 : vector<8x128xf32>
    %cst_15 = arith.constant 2.000000e-01 : f32
    %37 = vector.broadcast %cst_15 : f32 to vector<8x128xf32>
    %38 = arith.mulf %37, %34 : vector<8x128xf32>
    %39 = arith.select %36, %34, %38 : vector<8x128xi1>, vector<8x128xf32>
    %40 = arith.truncf %39 : vector<8x128xf32> to vector<8x128xbf16>
    %c2 = arith.constant 2 : index
    %c0_16 = arith.constant 0 : index
    %c0_17 = arith.constant 0 : index
    %41 = vector.load %arg2[%c2, %c0_16, %c0_17] : memref<8x128x128xbf16, #tpu.memory_space<vmem>>, vector<1x128x128xbf16>
    %42 = vector.shape_cast %41 : vector<1x128x128xbf16> to vector<128x128xbf16>
    %cst_18 = arith.constant dense<0.000000e+00> : vector<8x128xf32>
    %43 = tpu.matmul %40, %42, %cst_18 {dimension_numbers = #tpu.dot_dimension_numbers<[1], [0], [0], [1], [0, 0, 1, 1], [], []>} : vector<8x128xbf16>, vector<128x128xbf16>, vector<8x128xf32> -> vector<8x128xf32>
    %44 = vector.extract_strided_slice %11 {offsets = [2, 0], sizes = [1, 128], strides = [1, 1]} : vector<8x128xf32> to vector<1x128xf32>
    %45 = vector.shape_cast %44 : vector<1x128xf32> to vector<128xf32>
    %46 = vector.shape_cast %45 : vector<128xf32> to vector<1x128xf32>
    %47 = vector.broadcast %46 : vector<1x128xf32> to vector<8x128xf32>
    %48 = arith.addf %43, %47 : vector<8x128xf32>
    %cst_19 = arith.constant 0.000000e+00 : f32
    %49 = vector.broadcast %cst_19 : f32 to vector<8x128xf32>
    %50 = arith.cmpf ogt, %48, %49 : vector<8x128xf32>
    %cst_20 = arith.constant 2.000000e-01 : f32
    %51 = vector.broadcast %cst_20 : f32 to vector<8x128xf32>
    %52 = arith.mulf %51, %48 : vector<8x128xf32>
    %53 = arith.select %50, %48, %52 : vector<8x128xi1>, vector<8x128xf32>
    %54 = arith.truncf %53 : vector<8x128xf32> to vector<8x128xbf16>
    %c3 = arith.constant 3 : index
    %c0_21 = arith.constant 0 : index
    %c0_22 = arith.constant 0 : index
    %55 = vector.load %arg2[%c3, %c0_21, %c0_22] : memref<8x128x128xbf16, #tpu.memory_space<vmem>>, vector<1x128x128xbf16>
    %56 = vector.shape_cast %55 : vector<1x128x128xbf16> to vector<128x128xbf16>
    %cst_23 = arith.constant dense<0.000000e+00> : vector<8x128xf32>
    %57 = tpu.matmul %54, %56, %cst_23 {dimension_numbers = #tpu.dot_dimension_numbers<[1], [0], [0], [1], [0, 0, 1, 1], [], []>} : vector<8x128xbf16>, vector<128x128xbf16>, vector<8x128xf32> -> vector<8x128xf32>
    %58 = vector.extract_strided_slice %11 {offsets = [3, 0], sizes = [1, 128], strides = [1, 1]} : vector<8x128xf32> to vector<1x128xf32>
    %59 = vector.shape_cast %58 : vector<1x128xf32> to vector<128xf32>
    %60 = vector.shape_cast %59 : vector<128xf32> to vector<1x128xf32>
    %61 = vector.broadcast %60 : vector<1x128xf32> to vector<8x128xf32>
    %62 = arith.addf %57, %61 : vector<8x128xf32>
    %cst_24 = arith.constant 0.000000e+00 : f32
    %63 = vector.broadcast %cst_24 : f32 to vector<8x128xf32>
    %64 = arith.cmpf ogt, %62, %63 : vector<8x128xf32>
    %cst_25 = arith.constant 2.000000e-01 : f32
    %65 = vector.broadcast %cst_25 : f32 to vector<8x128xf32>
    %66 = arith.mulf %65, %62 : vector<8x128xf32>
    %67 = arith.select %64, %62, %66 : vector<8x128xi1>, vector<8x128xf32>
    %68 = arith.truncf %67 : vector<8x128xf32> to vector<8x128xbf16>
    %c4 = arith.constant 4 : index
    %c0_26 = arith.constant 0 : index
    %c0_27 = arith.constant 0 : index
    %69 = vector.load %arg2[%c4, %c0_26, %c0_27] : memref<8x128x128xbf16, #tpu.memory_space<vmem>>, vector<1x128x128xbf16>
    %70 = vector.shape_cast %69 : vector<1x128x128xbf16> to vector<128x128xbf16>
    %cst_28 = arith.constant dense<0.000000e+00> : vector<8x128xf32>
    %71 = tpu.matmul %68, %70, %cst_28 {dimension_numbers = #tpu.dot_dimension_numbers<[1], [0], [0], [1], [0, 0, 1, 1], [], []>} : vector<8x128xbf16>, vector<128x128xbf16>, vector<8x128xf32> -> vector<8x128xf32>
    %72 = vector.extract_strided_slice %11 {offsets = [4, 0], sizes = [1, 128], strides = [1, 1]} : vector<8x128xf32> to vector<1x128xf32>
    %73 = vector.shape_cast %72 : vector<1x128xf32> to vector<128xf32>
    %74 = vector.shape_cast %73 : vector<128xf32> to vector<1x128xf32>
    %75 = vector.broadcast %74 : vector<1x128xf32> to vector<8x128xf32>
    %76 = arith.addf %71, %75 : vector<8x128xf32>
    %cst_29 = arith.constant 0.000000e+00 : f32
    %77 = vector.broadcast %cst_29 : f32 to vector<8x128xf32>
    %78 = arith.cmpf ogt, %76, %77 : vector<8x128xf32>
    %cst_30 = arith.constant 2.000000e-01 : f32
    %79 = vector.broadcast %cst_30 : f32 to vector<8x128xf32>
    %80 = arith.mulf %79, %76 : vector<8x128xf32>
    %81 = arith.select %78, %76, %80 : vector<8x128xi1>, vector<8x128xf32>
    %82 = arith.truncf %81 : vector<8x128xf32> to vector<8x128xbf16>
    %c5 = arith.constant 5 : index
    %c0_31 = arith.constant 0 : index
    %c0_32 = arith.constant 0 : index
    %83 = vector.load %arg2[%c5, %c0_31, %c0_32] : memref<8x128x128xbf16, #tpu.memory_space<vmem>>, vector<1x128x128xbf16>
    %84 = vector.shape_cast %83 : vector<1x128x128xbf16> to vector<128x128xbf16>
    %cst_33 = arith.constant dense<0.000000e+00> : vector<8x128xf32>
    %85 = tpu.matmul %82, %84, %cst_33 {dimension_numbers = #tpu.dot_dimension_numbers<[1], [0], [0], [1], [0, 0, 1, 1], [], []>} : vector<8x128xbf16>, vector<128x128xbf16>, vector<8x128xf32> -> vector<8x128xf32>
    %86 = vector.extract_strided_slice %11 {offsets = [5, 0], sizes = [1, 128], strides = [1, 1]} : vector<8x128xf32> to vector<1x128xf32>
    %87 = vector.shape_cast %86 : vector<1x128xf32> to vector<128xf32>
    %88 = vector.shape_cast %87 : vector<128xf32> to vector<1x128xf32>
    %89 = vector.broadcast %88 : vector<1x128xf32> to vector<8x128xf32>
    %90 = arith.addf %85, %89 : vector<8x128xf32>
    %cst_34 = arith.constant 0.000000e+00 : f32
    %91 = vector.broadcast %cst_34 : f32 to vector<8x128xf32>
    %92 = arith.cmpf ogt, %90, %91 : vector<8x128xf32>
    %cst_35 = arith.constant 2.000000e-01 : f32
    %93 = vector.broadcast %cst_35 : f32 to vector<8x128xf32>
    %94 = arith.mulf %93, %90 : vector<8x128xf32>
    %95 = arith.select %92, %90, %94 : vector<8x128xi1>, vector<8x128xf32>
    %96 = arith.truncf %95 : vector<8x128xf32> to vector<8x128xbf16>
    %c6 = arith.constant 6 : index
    %c0_36 = arith.constant 0 : index
    %c0_37 = arith.constant 0 : index
    %97 = vector.load %arg2[%c6, %c0_36, %c0_37] : memref<8x128x128xbf16, #tpu.memory_space<vmem>>, vector<1x128x128xbf16>
    %98 = vector.shape_cast %97 : vector<1x128x128xbf16> to vector<128x128xbf16>
    %cst_38 = arith.constant dense<0.000000e+00> : vector<8x128xf32>
    %99 = tpu.matmul %96, %98, %cst_38 {dimension_numbers = #tpu.dot_dimension_numbers<[1], [0], [0], [1], [0, 0, 1, 1], [], []>} : vector<8x128xbf16>, vector<128x128xbf16>, vector<8x128xf32> -> vector<8x128xf32>
    %100 = vector.extract_strided_slice %11 {offsets = [6, 0], sizes = [1, 128], strides = [1, 1]} : vector<8x128xf32> to vector<1x128xf32>
    %101 = vector.shape_cast %100 : vector<1x128xf32> to vector<128xf32>
    %102 = vector.shape_cast %101 : vector<128xf32> to vector<1x128xf32>
    %103 = vector.broadcast %102 : vector<1x128xf32> to vector<8x128xf32>
    %104 = arith.addf %99, %103 : vector<8x128xf32>
    %cst_39 = arith.constant 0.000000e+00 : f32
    %105 = vector.broadcast %cst_39 : f32 to vector<8x128xf32>
    %106 = arith.cmpf ogt, %104, %105 : vector<8x128xf32>
    %cst_40 = arith.constant 2.000000e-01 : f32
    %107 = vector.broadcast %cst_40 : f32 to vector<8x128xf32>
    %108 = arith.mulf %107, %104 : vector<8x128xf32>
    %109 = arith.select %106, %104, %108 : vector<8x128xi1>, vector<8x128xf32>
    %110 = arith.truncf %109 : vector<8x128xf32> to vector<8x128xbf16>
    %c7 = arith.constant 7 : index
    %c0_41 = arith.constant 0 : index
    %c0_42 = arith.constant 0 : index
    %111 = vector.load %arg2[%c7, %c0_41, %c0_42] : memref<8x128x128xbf16, #tpu.memory_space<vmem>>, vector<1x128x128xbf16>
    %112 = vector.shape_cast %111 : vector<1x128x128xbf16> to vector<128x128xbf16>
    %cst_43 = arith.constant dense<0.000000e+00> : vector<8x128xf32>
    %113 = tpu.matmul %110, %112, %cst_43 {dimension_numbers = #tpu.dot_dimension_numbers<[1], [0], [0], [1], [0, 0, 1, 1], [], []>} : vector<8x128xbf16>, vector<128x128xbf16>, vector<8x128xf32> -> vector<8x128xf32>
    %114 = vector.extract_strided_slice %11 {offsets = [7, 0], sizes = [1, 128], strides = [1, 1]} : vector<8x128xf32> to vector<1x128xf32>
    %115 = vector.shape_cast %114 : vector<1x128xf32> to vector<128xf32>
    %116 = vector.shape_cast %115 : vector<128xf32> to vector<1x128xf32>
    %117 = vector.broadcast %116 : vector<1x128xf32> to vector<8x128xf32>
    %118 = arith.addf %113, %117 : vector<8x128xf32>
    %cst_44 = arith.constant 0.000000e+00 : f32
    %119 = vector.broadcast %cst_44 : f32 to vector<8x128xf32>
    %120 = arith.cmpf ogt, %118, %119 : vector<8x128xf32>
    %cst_45 = arith.constant 2.000000e-01 : f32
    %121 = vector.broadcast %cst_45 : f32 to vector<8x128xf32>
    %122 = arith.mulf %121, %118 : vector<8x128xf32>
    %123 = arith.select %120, %118, %122 : vector<8x128xi1>, vector<8x128xf32>
    %c0_46 = arith.constant 0 : index
    %c0_47 = arith.constant 0 : index
    %124 = vector.load %arg4[%c0_46, %c0_47] : memref<8x128xf32, #tpu.memory_space<vmem>>, vector<8x128xf32>
    tpu.vector_store %arg4[%c0_46, %c0_47], %123 {strides = array<i32>} : memref<8x128xf32, #tpu.memory_space<vmem>>, vector<8x128xf32>,
    return
  }
  func.func @transform_0(%arg0: i32) -> (i32, i32) {
    %c0_i32 = arith.constant 0 : i32
    %c0_i32_0 = arith.constant 0 : i32
    return %arg0, %c0_i32 : i32, i32
  }
  func.func @transform_1(%arg0: i32) -> (i32, i32, i32) {
    %c0_i32 = arith.constant 0 : i32
    %c0_i32_0 = arith.constant 0 : i32
    %c0_i32_1 = arith.constant 0 : i32
    %c0_i32_2 = arith.constant 0 : i32
    return %c0_i32, %c0_i32_0, %c0_i32_1 : i32, i32, i32
  }
  func.func @transform_2(%arg0: i32) -> (i32, i32) {
    %c0_i32 = arith.constant 0 : i32
    %c0_i32_0 = arith.constant 0 : i32
    %c0_i32_1 = arith.constant 0 : i32
    return %c0_i32, %c0_i32_0 : i32, i32
  }
  func.func @transform_3(%arg0: i32) -> (i32, i32) {
    %c0_i32 = arith.constant 0 : i32
    %c0_i32_0 = arith.constant 0 : i32
    return %arg0, %c0_i32 : i32, i32
  }
}

</mosaic_0001>

<llo_original>
// kernel: tpu_custom_call.1
$region0: #{tpu_custom_call.1}
  #allocation0 [shape = 'u32[]', space=smem, size = 0x4, offset = 0x4, fixed_abs, tag = 'smem constant byte address 0x4 - core index']
  #allocation1 [shape = 'u32[144,128]{1,0:T(1,128)}', space=vmem, size = 0x12000, scoped, tag = 'internal scratch']
  %s0 = inlined_call_operand.hbm [shape: f32[16,128], index: 0, kind: input, shape index: {}]
  %s1 = inlined_call_operand.hbm [shape: bf16[8,128,128], index: 1, kind: input, shape index: {}]
  %s2 = inlined_call_operand.hbm [shape: f32[8,128], index: 2, kind: input, shape index: {}]
  %s3 = inlined_call_operand.hbm [shape: f32[16,128], index: 3, kind: output, shape index: {}]
  %s4 = sld [smem:[#allocation0]]
  $region57: #{tpu_custom_call.1} parent=0
    _
  %s6 = ssub.s32 1, %s4
  %s7 = scalar_select 0, %s6, %s4
  $region1: #{tpu_custom_call.1} parent=0
    #allocation2 [shape = 'u8[8192]{0}', space=vmem, size = 0x2000, scoped, tag = 'input window, operand 0']
    #allocation3 [shape = 's32[2]{0}', space=sflag, size = 0x8, scoped, tag = 'scoped memory for tpu_custom_call.1']
    #allocation4 [shape = 's32[2]{0}', space=sflag, size = 0x8, scoped, tag = 'scoped memory for tpu_custom_call.1']
    #allocation5 [shape = 'u8[262144]{0}', space=vmem, size = 0x40000, scoped, tag = 'input window, operand 1, single buffered']
    #allocation6 [shape = 's32[1]{0}', space=sflag, size = 0x4, scoped, tag = 'scoped memory for tpu_custom_call.1']
    #allocation7 [shape = 'u8[4096]{0}', space=vmem, size = 0x1000, scoped, tag = 'input window, operand 2, single buffered']
    #allocation8 [shape = 'u8[8192]{0}', space=vmem, size = 0x2000, scoped, tag = 'output window, operand 0']
    %8 = vsyncpa [#allocation3], 0
    %s9 = scalar_lea.sflag [#allocation3], 1
    %10 = vsyncpa %s9, 0
    %11 = vsyncpa [#allocation6], 0
    %12 = vsyncpa [#allocation4], 0
    %s13 = scalar_lea.sflag [#allocation4], 1
    %14 = vsyncpa %s13, 0
    loop: start=0, step=1, limit=4
    $region2: #{tpu_custom_call.1} parent=1 // loop_pre_header
      _
    $region3: #{tpu_custom_call.1} parent=1 // loop_header
      %s16 = sphi 0, %s20
      %p17 = scmp.ge.s32.totalorder %s16, 4
      %s26 = sphi 0, %s28
      %s29 = sphi 0, %s26
      %s30 = sphi 0, %s29
      %s46 = sphi 0, %s30
      %s50 = sphi 0, %s50
      %s52 = sphi 0, %s50
      %s53 = sphi 0, %s52
      %s67 = sphi 0, %s53
      %s71 = sphi 0, %s71
      %s73 = sphi 0, %s71
      %s74 = sphi 0, %s73
      %s88 = sphi 0, %s74
      %s94 = sphi 0, %s96
      %s97 = sphi 0, %s94
      %s98 = sphi 0, %s97
      %s114 = sphi 0, %s98
    $region4: #{tpu_custom_call.1} parent=1 // loop_header_branch
      %19 = sbr.rel (%p17) target = $region8
    $region5: #{tpu_custom_call.1} parent=1 // loop_body
      %s21 = ssub.s32 %s16, 1
      %s22 = ssub.s32 %s16, 2
      %s23 = sadd.s32 %s16, 1
      %s24 = ssub.s32 %s16, %s23
      %p25 = scmp.eq.s32.totalorder %s24, 0
      %s27 = sadd.s32 %s26, 1
      %s28 = scalar_select %p25, %s26, %s27
      %p31 = pneg %p25
      %p32 = scmp.eq.s32.totalorder %s16, 1
      %p33 = por %p31, %p32
      %p34 = scmp.ne.s32.totalorder %s26, %s29
      %p35 = scmp.eq.s32.totalorder %s16, 0
      %p36 = por %p34, %p35
      %p37 = scmp.ne.s32.totalorder %s26, %s29
      %p38 = scmp.eq.s32.totalorder %s21, 1
      %p39 = por %p37, %p38
      %p40 = scmp.ne.s32.totalorder %s29, %s30
      %p41 = scmp.eq.s32.totalorder %s21, 0
      %p42 = por %p40, %p41
      %p43 = scmp.ne.s32.totalorder %s29, %s30
      %p44 = scmp.eq.s32.totalorder %s22, 1
      %p45 = por %p43, %p44
      %p47 = scmp.ne.s32.totalorder %s30, %s46
      %p48 = scmp.eq.s32.totalorder %s22, 0
      %p49 = por %p47, %p48
      %s51 = sadd.s32 %s50, 1
      %p54 = scmp.eq.s32.totalorder %s16, 1
      %p55 = scmp.ne.s32.totalorder %s50, %s52
      %p56 = scmp.eq.s32.totalorder %s16, 0
      %p57 = por %p55, %p56
      %p58 = scmp.ne.s32.totalorder %s50, %s52
      %p59 = scmp.eq.s32.totalorder %s21, 1
      %p60 = por %p58, %p59
      %p61 = scmp.ne.s32.totalorder %s52, %s53
      %p62 = scmp.eq.s32.totalorder %s21, 0
      %p63 = por %p61, %p62
      %p64 = scmp.ne.s32.totalorder %s52, %s53
      %p65 = scmp.eq.s32.totalorder %s22, 1
      %p66 = por %p64, %p65
      %p68 = scmp.ne.s32.totalorder %s53, %s67
      %p69 = scmp.eq.s32.totalorder %s22, 0
      %p70 = por %p68, %p69
      %s72 = sadd.s32 %s71, 1
      %p75 = scmp.eq.s32.totalorder %s16, 1
      %p76 = scmp.ne.s32.totalorder %s71, %s73
      %p77 = scmp.eq.s32.totalorder %s16, 0
      %p78 = por %p76, %p77
      %p79 = scmp.ne.s32.totalorder %s71, %s73
      %p80 = scmp.eq.s32.totalorder %s21, 1
      %p81 = por %p79, %p80
      %p82 = scmp.ne.s32.totalorder %s73, %s74
      %p83 = scmp.eq.s32.totalorder %s21, 0
      %p84 = por %p82, %p83
      %p85 = scmp.ne.s32.totalorder %s73, %s74
      %p86 = scmp.eq.s32.totalorder %s22, 1
      %p87 = por %p85, %p86
      %p89 = scmp.ne.s32.totalorder %s74, %s88
      %p90 = scmp.eq.s32.totalorder %s22, 0
      %p91 = por %p89, %p90
      %s92 = ssub.s32 %s16, %s23
      %p93 = scmp.eq.s32.totalorder %s92, 0
      %s95 = sadd.s32 %s94, 1
      %s96 = scalar_select %p93, %s94, %s95
      %p99 = pneg %p93
      %p100 = scmp.eq.s32.totalorder %s16, 1
      %p101 = por %p99, %p100
      %p102 = scmp.ne.s32.totalorder %s94, %s97
      %p103 = scmp.eq.s32.totalorder %s16, 0
      %p104 = por %p102, %p103
      %p105 = scmp.ne.s32.totalorder %s94, %s97
      %p106 = scmp.eq.s32.totalorder %s21, 1
      %p107 = por %p105, %p106
      %p108 = scmp.ne.s32.totalorder %s97, %s98
      %p109 = scmp.eq.s32.totalorder %s21, 0
      %p110 = por %p108, %p109
      %p111 = scmp.ne.s32.totalorder %s97, %s98
      %p112 = scmp.eq.s32.totalorder %s22, 1
      %p113 = por %p111, %p112
      %p115 = scmp.ne.s32.totalorder %s98, %s114
      %p116 = scmp.eq.s32.totalorder %s22, 0
      %p117 = por %p115, %p116
      %p118 = scmp.le.s32.totalorder 1, %s16
      %p119 = scmp.lt.s32.totalorder %s16, 3
      %p120 = pnand %p118, %p119
      %p121 = pneg %p120
      // Predicated region
      $region9: #{tpu_custom_call.1} parent=5 // pred_check
        _
      $region10: #{tpu_custom_call.1} parent=5 // pred_check_branch
        %123 = sbr.rel (%p120) target = $region12
      $region11: #{tpu_custom_call.1} parent=5 // pred_region
        %s124 = ssub.s32 %s16, 1
        // Predicated region
        $region13: #{tpu_custom_call.1} parent=11 // pred_check
          %p125 = pneg %p63
        $region14: #{tpu_custom_call.1} parent=11 // pred_check_branch
          %127 = sbr.rel (%p125) target = $region16
        $region15: #{tpu_custom_call.1} parent=11 // pred_region
          %s129 = ssub.s32 8192, 8192
          %130 = vsyncadd [#allocation6], %s129
          %s131 = sshll.u32 [#allocation5], 4
          %s132 = int_to_ptr.vmem [resolvable:$true] %s131
          %137 = dma.hbm_to_vmem [thread:$0]  %s1, 8192, %s132, [#allocation6], 64, 64, 4
        $region16: #{tpu_custom_call.1} parent=11 // pred_fallthru
          _
        // Predicated region
        $region17: #{tpu_custom_call.1} parent=11 // pred_check
          %p138 = pneg %p84
        $region18: #{tpu_custom_call.1} parent=11 // pred_check_branch
          %140 = sbr.rel (%p138) target = $region20
        $region19: #{tpu_custom_call.1} parent=11 // pred_region
          %s142 = ssub.s32 128, 128
          %143 = vsyncadd [#allocation6], %s142
          %s145 = sshll.u32 [#allocation7], 4
          %s146 = int_to_ptr.vmem [resolvable:$true] %s145
          %148 = dma.hbm_to_vmem [thread:$0]  %s2, 128, %s146, [#allocation6]
        $region20: #{tpu_custom_call.1} parent=11 // pred_fallthru
          _
      $region12: #{tpu_custom_call.1} parent=5 // pred_fallthru
        _
      %p149 = scmp.lt.s32.totalorder %s16, 2
      // Predicated region
      $region21: #{tpu_custom_call.1} parent=5 // pred_check
        %p150 = pneg %p149
      $region22: #{tpu_custom_call.1} parent=5 // pred_check_branch
        %152 = sbr.rel (%p150) target = $region24
      $region23: #{tpu_custom_call.1} parent=5 // pred_region
        // Predicated region
        $region25: #{tpu_custom_call.1} parent=23 // pred_check
          %p153 = pneg %p36
        $region26: #{tpu_custom_call.1} parent=23 // pred_check_branch
          %155 = sbr.rel (%p153) target = $region28
        $region27: #{tpu_custom_call.1} parent=23 // pred_region
          %s156 = sand.u32 %s26, 1
          %s157 = scalar_lea.sflag [#allocation3], %s156
          %s158 = sand.u32 %s26, 1
          %s159 = smul.addr %s158, 8
          %s160 = scalar_lea.vmem [#allocation2], %s159
          %s162 = ssub.s32 128, 128
          %163 = vsyncadd %s157, %s162
          %s164 = smul.addr %s16, 128
          %s165 = scalar_lea.hbm %s0, %s164
          %s167 = sshll.u32 %s160, 4
          %s168 = int_to_ptr.vmem [resolvable:$true] %s167
          %170 = dma.hbm_to_vmem [thread:$0]  %s165, 128, %s168, %s157
        $region28: #{tpu_custom_call.1} parent=23 // pred_fallthru
          _
      $region24: #{tpu_custom_call.1} parent=5 // pred_fallthru
        _
      %p171 = scmp.le.s32.totalorder 1, %s16
      %p172 = scmp.lt.s32.totalorder %s16, 3
      %p173 = pnand %p171, %p172
      %p174 = pneg %p173
      // Predicated region
      $region29: #{tpu_custom_call.1} parent=5 // pred_check
        _
      $region30: #{tpu_custom_call.1} parent=5 // pred_check_branch
        %176 = sbr.rel (%p173) target = $region32
      $region31: #{tpu_custom_call.1} parent=5 // pred_region
        %s177 = ssub.s32 %s16, 1
        %s178 = sand.u32 %s29, 1
        %s179 = scalar_lea.sflag [#allocation3], %s178
        %s180 = sand.u32 %s29, 1
        %s181 = smul.addr %s180, 8
        %s182 = scalar_lea.vmem [#allocation2], %s181
        // Predicated region
        $region33: #{tpu_custom_call.1} parent=31 // pred_check
          %p183 = pneg %p42
        $region34: #{tpu_custom_call.1} parent=31 // pred_check_branch
          %185 = sbr.rel (%p183) target = $region36
        $region35: #{tpu_custom_call.1} parent=31 // pred_region
          %186 = dma.done %s179, 128
        $region36: #{tpu_custom_call.1} parent=31 // pred_fallthru
          _
        // Predicated region
        $region37: #{tpu_custom_call.1} parent=31 // pred_check
          %p187 = pneg %p63
        $region38: #{tpu_custom_call.1} parent=31 // pred_check_branch
          %189 = sbr.rel (%p187) target = $region40
        $region39: #{tpu_custom_call.1} parent=31 // pred_region
          %190 = dma.done [#allocation6], 8192
        $region40: #{tpu_custom_call.1} parent=31 // pred_fallthru
          _
        // Predicated region
        $region41: #{tpu_custom_call.1} parent=31 // pred_check
          %p191 = pneg %p84
        $region42: #{tpu_custom_call.1} parent=31 // pred_check_branch
          %193 = sbr.rel (%p191) target = $region44
        $region43: #{tpu_custom_call.1} parent=31 // pred_region
          %194 = dma.done [#allocation6], 128
        $region44: #{tpu_custom_call.1} parent=31 // pred_fallthru
          _
        %s195 = sand.u32 %s29, 1
        %s196 = scalar_lea.sflag [#allocation3], %s195
        %s197 = sand.u32 %s29, 1
        %s198 = smul.addr %s197, 8
        %s199 = scalar_lea.vmem [#allocation2], %s198
        %p200 = pneg %p42
        %p201 = pneg %p39
        %p202 = pneg %p63
        %p203 = pneg %p60
        %p204 = pneg %p84
        %p205 = pneg %p81
        %p206 = pneg %p110
        %p207 = pneg %p107
        %s208 = sand.u32 %s97, 1
        %s209 = scalar_lea.sflag [#allocation4], %s208
        %s210 = sand.u32 %s97, 1
        %s211 = smul.addr %s210, 8
        %s212 = scalar_lea.vmem [#allocation8], %s211
        %v214 = vld [vmem:[%s182] sm:$0xff]
        %v215 = vmul.f32 %v214, %v214
        %216 = vadd.xlane.f32.xlu0 %v215
        %v217 = vpop.xlane.xlu0 %216
        %v218 = vrcp.pop 128.0
        %v219 = vmul.f32 %v217, %v218
        %v220 = vadd.f32 %v219, 1e-08
        %v221 = vrsqrt.pop %v220
        %v222 = vmul.f32 %v214, %v221
        %v223 = vld [vmem:[#allocation7] sm:$0xff]
        %v224 = vpack.c.bf16 %v222, %v222
        %v225 = vld [vmem:[#allocation5] sm:$0xf]
        %v226 = vld [vmem:[#allocation5 + $0x4] sm:$0xf]
        %v227 = vld [vmem:[#allocation5 + $0x8] sm:$0xf]
        %v228 = vld [vmem:[#allocation5 + $0xc] sm:$0xf]
        %v229 = vld [vmem:[#allocation5 + $0x10] sm:$0xf]
        %v230 = vld [vmem:[#allocation5 + $0x14] sm:$0xf]
        %v231 = vld [vmem:[#allocation5 + $0x18] sm:$0xf]
        %v232 = vld [vmem:[#allocation5 + $0x1c] sm:$0xf]
        %v233 = vld [vmem:[#allocation5 + $0x20] sm:$0xf]
        %v234 = vld [vmem:[#allocation5 + $0x24] sm:$0xf]
        %v235 = vld [vmem:[#allocation5 + $0x28] sm:$0xf]
        %v236 = vld [vmem:[#allocation5 + $0x2c] sm:$0xf]
        %v237 = vld [vmem:[#allocation5 + $0x30] sm:$0xf]
        %v238 = vld [vmem:[#allocation5 + $0x34] sm:$0xf]
        %v239 = vld [vmem:[#allocation5 + $0x38] sm:$0xf]
        %v240 = vld [vmem:[#allocation5 + $0x3c] sm:$0xf]
        %v241 = vlaneseq
        %v242 = vshrl.u32 %v241, 7
        %v243 = vsub.s32 0, %v242
        %v244 = vrot.slane %v223, %v243
        %v261 = vunpack.c.l.b16 %v225
        %v262 = vunpack.c.l.b16 %v226
        %v263 = vunpack.c.l.b16 %v227
        %v264 = vunpack.c.l.b16 %v228
        %v265 = vunpack.c.l.b16 %v229
        %v266 = vunpack.c.l.b16 %v230
        %v267 = vunpack.c.l.b16 %v231
        %v268 = vunpack.c.l.b16 %v232
        %v269 = vunpack.c.l.b16 %v233
        %v270 = vunpack.c.l.b16 %v234
        %v271 = vunpack.c.l.b16 %v235
        %v272 = vunpack.c.l.b16 %v236
        %v273 = vunpack.c.l.b16 %v237
        %v274 = vunpack.c.l.b16 %v238
        %v275 = vunpack.c.l.b16 %v239
        %v276 = vunpack.c.l.b16 %v240
        %v277 = vpack.c.b16 %v262, %v261
        %v278 = vpack.c.b16 %v264, %v263
        %v279 = vpack.c.b16 %v266, %v265
        %v280 = vpack.c.b16 %v268, %v267
        %v281 = vpack.c.b16 %v270, %v269
        %v282 = vpack.c.b16 %v272, %v271
        %v283 = vpack.c.b16 %v274, %v273
        %v284 = vpack.c.b16 %v276, %v275
        %293 = vmatprep.subr.bf16.mxu0 0
        %294 = vmatpush1.bf16.msra.mxu0 %v277
        %295 = vmatprep.subr.bf16.mxu0 0
        %296 = vmatpush1.bf16.msra.mxu0 %v278
        %297 = vmatprep.subr.bf16.mxu0 0
        %298 = vmatpush1.bf16.msra.mxu0 %v279
        %299 = vmatprep.subr.bf16.mxu0 0
        %300 = vmatpush1.bf16.msra.mxu0 %v280
        %301 = vmatprep.subr.bf16.mxu0 0
        %302 = vmatpush1.bf16.msra.mxu0 %v281
        %303 = vmatprep.subr.bf16.mxu0 0
        %304 = vmatpush1.bf16.msra.mxu0 %v282
        %305 = vmatprep.subr.bf16.mxu0 0
        %306 = vmatpush1.bf16.msra.mxu0 %v283
        %307 = vmatprep.subr.bf16.mxu0 0
        %308 = vmatpush1.bf16.msra.mxu0 %v284
        %309 = vmatprep.subr.bf16.mxu0 0
        %310 = vmatpush1.bf16.msra.mxu0 0
        %311 = vmatprep.subr.bf16.mxu0 0
        %312 = vmatpush1.bf16.msra.mxu0 0
        %313 = vmatprep.subr.bf16.mxu0 0
        %314 = vmatpush1.bf16.msra.mxu0 0
        %315 = vmatprep.subr.bf16.mxu0 0
        %316 = vmatpush1.bf16.msra.mxu0 0
        %317 = vmatprep.subr.bf16.mxu0 0
        %318 = vmatpush1.bf16.msra.mxu0 0
        %319 = vmatprep.subr.bf16.mxu0 0
        %320 = vmatpush1.bf16.msra.mxu0 0
        %321 = vmatprep.subr.bf16.mxu0 0
        %322 = vmatpush1.bf16.msra.mxu0 0
        %323 = vmatprep.subr.bf16.mxu0 0
        %324 = vmatpush1.bf16.msra.mxu0 0
        %325 = vmatprep.mubr.bf16.mxu0 0
        %326 = vmatmul.mubr.bf16.gmra.mrb[0].mxu0 %v224
        %v327 = vpop.f32.mrb[0].mxu0
        %v328 = vadd.f32 %v244, %v327
        %v329 = vpop.f32.mrb[0].mxu0
        %v330 = vpop.f32.mrb[0].mxu0
        %v331 = vpop.f32.mrb[0].mxu0
        %332 = vdwg.mxu0
        %vm333 = vcmp.gt.f32.partialorder %v328, 0.0
        %v334 = vmul.f32 %v328, 0.2
        %v335 = vsel %vm333, %v328, %v334
        %v336 = vpack.c.bf16 %v335, %v335
        %s337 = scalar_lea.vmem [#allocation5], 64
        %v338 = vld [vmem:[%s337] sm:$0xf]
        %v339 = vld [vmem:[%s337 + $0x4] sm:$0xf]
        %v340 = vld [vmem:[%s337 + $0x8] sm:$0xf]
        %v341 = vld [vmem:[%s337 + $0xc] sm:$0xf]
        %v342 = vld [vmem:[%s337 + $0x10] sm:$0xf]
        %v343 = vld [vmem:[%s337 + $0x14] sm:$0xf]
        %v344 = vld [vmem:[%s337 + $0x18] sm:$0xf]
        %v345 = vld [vmem:[%s337 + $0x1c] sm:$0xf]
        %v346 = vld [vmem:[%s337 + $0x20] sm:$0xf]
        %v347 = vld [vmem:[%s337 + $0x24] sm:$0xf]
        %v348 = vld [vmem:[%s337 + $0x28] sm:$0xf]
        %v349 = vld [vmem:[%s337 + $0x2c] sm:$0xf]
        %v350 = vld [vmem:[%s337 + $0x30] sm:$0xf]
        %v351 = vld [vmem:[%s337 + $0x34] sm:$0xf]
        %v352 = vld [vmem:[%s337 + $0x38] sm:$0xf]
        %v353 = vld [vmem:[%s337 + $0x3c] sm:$0xf]
        %v354 = vlaneseq
        %v355 = vshrl.u32 %v354, 7
        %v356 = vsub.s32 1, %v355
        %v357 = vrot.slane %v223, %v356
        %v374 = vunpack.c.l.b16 %v338
        %v375 = vunpack.c.l.b16 %v339
        %v376 = vunpack.c.l.b16 %v340
        %v377 = vunpack.c.l.b16 %v341
        %v378 = vunpack.c.l.b16 %v342
        %v379 = vunpack.c.l.b16 %v343
        %v380 = vunpack.c.l.b16 %v344
        %v381 = vunpack.c.l.b16 %v345
        %v382 = vunpack.c.l.b16 %v346
        %v383 = vunpack.c.l.b16 %v347
        %v384 = vunpack.c.l.b16 %v348
        %v385 = vunpack.c.l.b16 %v349
        %v386 = vunpack.c.l.b16 %v350
        %v387 = vunpack.c.l.b16 %v351
        %v388 = vunpack.c.l.b16 %v352
        %v389 = vunpack.c.l.b16 %v353
        %v390 = vpack.c.b16 %v375, %v374
        %v391 = vpack.c.b16 %v377, %v376
        %v392 = vpack.c.b16 %v379, %v378
        %v393 = vpack.c.b16 %v381, %v380
        %v394 = vpack.c.b16 %v383, %v382
        %v395 = vpack.c.b16 %v385, %v384
        %v396 = vpack.c.b16 %v387, %v386
        %v397 = vpack.c.b16 %v389, %v388
        %406 = vmatprep.subr.bf16.mxu0 0
        %407 = vmatpush1.bf16.msra.mxu0 %v390
        %408 = vmatprep.subr.bf16.mxu0 0
        %409 = vmatpush1.bf16.msra.mxu0 %v391
        %410 = vmatprep.subr.bf16.mxu0 0
        %411 = vmatpush1.bf16.msra.mxu0 %v392
        %412 = vmatprep.subr.bf16.mxu0 0
        %413 = vmatpush1.bf16.msra.mxu0 %v393
        %414 = vmatprep.subr.bf16.mxu0 0
        %415 = vmatpush1.bf16.msra.mxu0 %v394
        %416 = vmatprep.subr.bf16.mxu0 0
        %417 = vmatpush1.bf16.msra.mxu0 %v395
        %418 = vmatprep.subr.bf16.mxu0 0
        %419 = vmatpush1.bf16.msra.mxu0 %v396
        %420 = vmatprep.subr.bf16.mxu0 0
        %421 = vmatpush1.bf16.msra.mxu0 %v397
        %422 = vmatprep.subr.bf16.mxu0 0
        %423 = vmatpush1.bf16.msra.mxu0 0
        %424 = vmatprep.subr.bf16.mxu0 0
        %425 = vmatpush1.bf16.msra.mxu0 0
        %426 = vmatprep.subr.bf16.mxu0 0
        %427 = vmatpush1.bf16.msra.mxu0 0
        %428 = vmatprep.subr.bf16.mxu0 0
        %429 = vmatpush1.bf16.msra.mxu0 0
        %430 = vmatprep.subr.bf16.mxu0 0
        %431 = vmatpush1.bf16.msra.mxu0 0
        %432 = vmatprep.subr.bf16.mxu0 0
        %433 = vmatpush1.bf16.msra.mxu0 0
        %434 = vmatprep.subr.bf16.mxu0 0
        %435 = vmatpush1.bf16.msra.mxu0 0
        %436 = vmatprep.subr.bf16.mxu0 0
        %437 = vmatpush1.bf16.msra.mxu0 0
        %438 = vmatprep.mubr.bf16.mxu0 0
        %439 = vmatmul.mubr.bf16.gmra.mrb[0].mxu0 %v336
        %v440 = vpop.f32.mrb[0].mxu0
        %v441 = vadd.f32 %v357, %v440
        %v442 = vpop.f32.mrb[0].mxu0
        %v443 = vpop.f32.mrb[0].mxu0
        %v444 = vpop.f32.mrb[0].mxu0
        %445 = vdwg.mxu0
        %vm446 = vcmp.gt.f32.partialorder %v441, 0.0
        %v447 = vmul.f32 %v441, 0.2
        %v448 = vsel %vm446, %v441, %v447
        %v449 = vpack.c.bf16 %v448, %v448
        %s450 = scalar_lea.vmem [#allocation5], 128
        %v451 = vld [vmem:[%s450] sm:$0xf]
        %v452 = vld [vmem:[%s450 + $0x4] sm:$0xf]
        %v453 = vld [vmem:[%s450 + $0x8] sm:$0xf]
        %v454 = vld [vmem:[%s450 + $0xc] sm:$0xf]
        %v455 = vld [vmem:[%s450 + $0x10] sm:$0xf]
        %v456 = vld [vmem:[%s450 + $0x14] sm:$0xf]
        %v457 = vld [vmem:[%s450 + $0x18] sm:$0xf]
        %v458 = vld [vmem:[%s450 + $0x1c] sm:$0xf]
        %v459 = vld [vmem:[%s450 + $0x20] sm:$0xf]
        %v460 = vld [vmem:[%s450 + $0x24] sm:$0xf]
        %v461 = vld [vmem:[%s450 + $0x28] sm:$0xf]
        %v462 = vld [vmem:[%s450 + $0x2c] sm:$0xf]
        %v463 = vld [vmem:[%s450 + $0x30] sm:$0xf]
        %v464 = vld [vmem:[%s450 + $0x34] sm:$0xf]
        %v465 = vld [vmem:[%s450 + $0x38] sm:$0xf]
        %v466 = vld [vmem:[%s450 + $0x3c] sm:$0xf]
        %v467 = vlaneseq
        %v468 = vshrl.u32 %v467, 7
        %v469 = vsub.s32 2, %v468
        %v470 = vrot.slane %v223, %v469
        %v487 = vunpack.c.l.b16 %v451
        %v488 = vunpack.c.l.b16 %v452
        %v489 = vunpack.c.l.b16 %v453
        %v490 = vunpack.c.l.b16 %v454
        %v491 = vunpack.c.l.b16 %v455
        %v492 = vunpack.c.l.b16 %v456
        %v493 = vunpack.c.l.b16 %v457
        %v494 = vunpack.c.l.b16 %v458
        %v495 = vunpack.c.l.b16 %v459
        %v496 = vunpack.c.l.b16 %v460
        %v497 = vunpack.c.l.b16 %v461
        %v498 = vunpack.c.l.b16 %v462
        %v499 = vunpack.c.l.b16 %v463
        %v500 = vunpack.c.l.b16 %v464
        %v501 = vunpack.c.l.b16 %v465
        %v502 = vunpack.c.l.b16 %v466
        %v503 = vpack.c.b16 %v488, %v487
        %v504 = vpack.c.b16 %v490, %v489
        %v505 = vpack.c.b16 %v492, %v491
        %v506 = vpack.c.b16 %v494, %v493
        %v507 = vpack.c.b16 %v496, %v495
        %v508 = vpack.c.b16 %v498, %v497
        %v509 = vpack.c.b16 %v500, %v499
        %v510 = vpack.c.b16 %v502, %v501
        %519 = vmatprep.subr.bf16.mxu0 0
        %520 = vmatpush1.bf16.msra.mxu0 %v503
        %521 = vmatprep.subr.bf16.mxu0 0
        %522 = vmatpush1.bf16.msra.mxu0 %v504
        %523 = vmatprep.subr.bf16.mxu0 0
        %524 = vmatpush1.bf16.msra.mxu0 %v505
        %525 = vmatprep.subr.bf16.mxu0 0
        %526 = vmatpush1.bf16.msra.mxu0 %v506
        %527 = vmatprep.subr.bf16.mxu0 0
        %528 = vmatpush1.bf16.msra.mxu0 %v507
        %529 = vmatprep.subr.bf16.mxu0 0
        %530 = vmatpush1.bf16.msra.mxu0 %v508
        %531 = vmatprep.subr.bf16.mxu0 0
        %532 = vmatpush1.bf16.msra.mxu0 %v509
        %533 = vmatprep.subr.bf16.mxu0 0
        %534 = vmatpush1.bf16.msra.mxu0 %v510
        %535 = vmatprep.subr.bf16.mxu0 0
        %536 = vmatpush1.bf16.msra.mxu0 0
        %537 = vmatprep.subr.bf16.mxu0 0
        %538 = vmatpush1.bf16.msra.mxu0 0
        %539 = vmatprep.subr.bf16.mxu0 0
        %540 = vmatpush1.bf16.msra.mxu0 0
        %541 = vmatprep.subr.bf16.mxu0 0
        %542 = vmatpush1.bf16.msra.mxu0 0
        %543 = vmatprep.subr.bf16.mxu0 0
        %544 = vmatpush1.bf16.msra.mxu0 0
        %545 = vmatprep.subr.bf16.mxu0 0
        %546 = vmatpush1.bf16.msra.mxu0 0
        %547 = vmatprep.subr.bf16.mxu0 0
        %548 = vmatpush1.bf16.msra.mxu0 0
        %549 = vmatprep.subr.bf16.mxu0 0
        %550 = vmatpush1.bf16.msra.mxu0 0
        %551 = vmatprep.mubr.bf16.mxu0 0
        %552 = vmatmul.mubr.bf16.gmra.mrb[0].mxu0 %v449
        %v553 = vpop.f32.mrb[0].mxu0
        %v554 = vadd.f32 %v470, %v553
        %v555 = vpop.f32.mrb[0].mxu0
        %v556 = vpop.f32.mrb[0].mxu0
        %v557 = vpop.f32.mrb[0].mxu0
        %558 = vdwg.mxu0
        %vm559 = vcmp.gt.f32.partialorder %v554, 0.0
        %v560 = vmul.f32 %v554, 0.2
        %v561 = vsel %vm559, %v554, %v560
        %v562 = vpack.c.bf16 %v561, %v561
        %s563 = scalar_lea.vmem [#allocation5], 192
        %v564 = vld [vmem:[%s563] sm:$0xf]
        %v565 = vld [vmem:[%s563 + $0x4] sm:$0xf]
        %v566 = vld [vmem:[%s563 + $0x8] sm:$0xf]
        %v567 = vld [vmem:[%s563 + $0xc] sm:$0xf]
        %v568 = vld [vmem:[%s563 + $0x10] sm:$0xf]
        %v569 = vld [vmem:[%s563 + $0x14] sm:$0xf]
        %v570 = vld [vmem:[%s563 + $0x18] sm:$0xf]
        %v571 = vld [vmem:[%s563 + $0x1c] sm:$0xf]
        %v572 = vld [vmem:[%s563 + $0x20] sm:$0xf]
        %v573 = vld [vmem:[%s563 + $0x24] sm:$0xf]
        %v574 = vld [vmem:[%s563 + $0x28] sm:$0xf]
        %v575 = vld [vmem:[%s563 + $0x2c] sm:$0xf]
        %v576 = vld [vmem:[%s563 + $0x30] sm:$0xf]
        %v577 = vld [vmem:[%s563 + $0x34] sm:$0xf]
        %v578 = vld [vmem:[%s563 + $0x38] sm:$0xf]
        %v579 = vld [vmem:[%s563 + $0x3c] sm:$0xf]
        %v580 = vlaneseq
        %v581 = vshrl.u32 %v580, 7
        %v582 = vsub.s32 3, %v581
        %v583 = vrot.slane %v223, %v582
        %v600 = vunpack.c.l.b16 %v564
        %v601 = vunpack.c.l.b16 %v565
        %v602 = vunpack.c.l.b16 %v566
        %v603 = vunpack.c.l.b16 %v567
        %v604 = vunpack.c.l.b16 %v568
        %v605 = vunpack.c.l.b16 %v569
        %v606 = vunpack.c.l.b16 %v570
        %v607 = vunpack.c.l.b16 %v571
        %v608 = vunpack.c.l.b16 %v572
        %v609 = vunpack.c.l.b16 %v573
        %v610 = vunpack.c.l.b16 %v574
        %v611 = vunpack.c.l.b16 %v575
        %v612 = vunpack.c.l.b16 %v576
        %v613 = vunpack.c.l.b16 %v577
        %v614 = vunpack.c.l.b16 %v578
        %v615 = vunpack.c.l.b16 %v579
        %v616 = vpack.c.b16 %v601, %v600
        %v617 = vpack.c.b16 %v603, %v602
        %v618 = vpack.c.b16 %v605, %v604
        %v619 = vpack.c.b16 %v607, %v606
        %v620 = vpack.c.b16 %v609, %v608
        %v621 = vpack.c.b16 %v611, %v610
        %v622 = vpack.c.b16 %v613, %v612
        %v623 = vpack.c.b16 %v615, %v614
        %632 = vmatprep.subr.bf16.mxu0 0
        %633 = vmatpush1.bf16.msra.mxu0 %v616
        %634 = vmatprep.subr.bf16.mxu0 0
        %635 = vmatpush1.bf16.msra.mxu0 %v617
        %636 = vmatprep.subr.bf16.mxu0 0
        %637 = vmatpush1.bf16.msra.mxu0 %v618
        %638 = vmatprep.subr.bf16.mxu0 0
        %639 = vmatpush1.bf16.msra.mxu0 %v619
        %640 = vmatprep.subr.bf16.mxu0 0
        %641 = vmatpush1.bf16.msra.mxu0 %v620
        %642 = vmatprep.subr.bf16.mxu0 0
        %643 = vmatpush1.bf16.msra.mxu0 %v621
        %644 = vmatprep.subr.bf16.mxu0 0
        %645 = vmatpush1.bf16.msra.mxu0 %v622
        %646 = vmatprep.subr.bf16.mxu0 0
        %647 = vmatpush1.bf16.msra.mxu0 %v623
        %648 = vmatprep.subr.bf16.mxu0 0
        %649 = vmatpush1.bf16.msra.mxu0 0
        %650 = vmatprep.subr.bf16.mxu0 0
        %651 = vmatpush1.bf16.msra.mxu0 0
        %652 = vmatprep.subr.bf16.mxu0 0
        %653 = vmatpush1.bf16.msra.mxu0 0
        %654 = vmatprep.subr.bf16.mxu0 0
        %655 = vmatpush1.bf16.msra.mxu0 0
        %656 = vmatprep.subr.bf16.mxu0 0
        %657 = vmatpush1.bf16.msra.mxu0 0
        %658 = vmatprep.subr.bf16.mxu0 0
        %659 = vmatpush1.bf16.msra.mxu0 0
        %660 = vmatprep.subr.bf16.mxu0 0
        %661 = vmatpush1.bf16.msra.mxu0 0
        %662 = vmatprep.subr.bf16.mxu0 0
        %663 = vmatpush1.bf16.msra.mxu0 0
        %664 = vmatprep.mubr.bf16.mxu0 0
        %665 = vmatmul.mubr.bf16.gmra.mrb[0].mxu0 %v562
        %v666 = vpop.f32.mrb[0].mxu0
        %v667 = vadd.f32 %v583, %v666
        %v668 = vpop.f32.mrb[0].mxu0
        %v669 = vpop.f32.mrb[0].mxu0
        %v670 = vpop.f32.mrb[0].mxu0
        %671 = vdwg.mxu0
        %vm672 = vcmp.gt.f32.partialorder %v667, 0.0
        %v673 = vmul.f32 %v667, 0.2
        %v674 = vsel %vm672, %v667, %v673
        %v675 = vpack.c.bf16 %v674, %v674
        %s676 = scalar_lea.vmem [#allocation5], 256
        %v677 = vld [vmem:[%s676] sm:$0xf]
        %v678 = vld [vmem:[%s676 + $0x4] sm:$0xf]
        %v679 = vld [vmem:[%s676 + $0x8] sm:$0xf]
        %v680 = vld [vmem:[%s676 + $0xc] sm:$0xf]
        %v681 = vld [vmem:[%s676 + $0x10] sm:$0xf]
        %v682 = vld [vmem:[%s676 + $0x14] sm:$0xf]
        %v683 = vld [vmem:[%s676 + $0x18] sm:$0xf]
        %v684 = vld [vmem:[%s676 + $0x1c] sm:$0xf]
        %v685 = vld [vmem:[%s676 + $0x20] sm:$0xf]
        %v686 = vld [vmem:[%s676 + $0x24] sm:$0xf]
        %v687 = vld [vmem:[%s676 + $0x28] sm:$0xf]
        %v688 = vld [vmem:[%s676 + $0x2c] sm:$0xf]
        %v689 = vld [vmem:[%s676 + $0x30] sm:$0xf]
        %v690 = vld [vmem:[%s676 + $0x34] sm:$0xf]
        %v691 = vld [vmem:[%s676 + $0x38] sm:$0xf]
        %v692 = vld [vmem:[%s676 + $0x3c] sm:$0xf]
        %v693 = vlaneseq
        %v694 = vshrl.u32 %v693, 7
        %v695 = vsub.s32 4, %v694
        %v696 = vrot.slane %v223, %v695
        %v713 = vunpack.c.l.b16 %v677
        %v714 = vunpack.c.l.b16 %v678
        %v715 = vunpack.c.l.b16 %v679
        %v716 = vunpack.c.l.b16 %v680
        %v717 = vunpack.c.l.b16 %v681
        %v718 = vunpack.c.l.b16 %v682
        %v719 = vunpack.c.l.b16 %v683
        %v720 = vunpack.c.l.b16 %v684
        %v721 = vunpack.c.l.b16 %v685
        %v722 = vunpack.c.l.b16 %v686
        %v723 = vunpack.c.l.b16 %v687
        %v724 = vunpack.c.l.b16 %v688
        %v725 = vunpack.c.l.b16 %v689
        %v726 = vunpack.c.l.b16 %v690
        %v727 = vunpack.c.l.b16 %v691
        %v728 = vunpack.c.l.b16 %v692
        %v729 = vpack.c.b16 %v714, %v713
        %v730 = vpack.c.b16 %v716, %v715
        %v731 = vpack.c.b16 %v718, %v717
        %v732 = vpack.c.b16 %v720, %v719
        %v733 = vpack.c.b16 %v722, %v721
        %v734 = vpack.c.b16 %v724, %v723
        %v735 = vpack.c.b16 %v726, %v725
        %v736 = vpack.c.b16 %v728, %v727
        %745 = vmatprep.subr.bf16.mxu0 0
        %746 = vmatpush1.bf16.msra.mxu0 %v729
        %747 = vmatprep.subr.bf16.mxu0 0
        %748 = vmatpush1.bf16.msra.mxu0 %v730
        %749 = vmatprep.subr.bf16.mxu0 0
        %750 = vmatpush1.bf16.msra.mxu0 %v731
        %751 = vmatprep.subr.bf16.mxu0 0
        %752 = vmatpush1.bf16.msra.mxu0 %v732
        %753 = vmatprep.subr.bf16.mxu0 0
        %754 = vmatpush1.bf16.msra.mxu0 %v733
        %755 = vmatprep.subr.bf16.mxu0 0
        %756 = vmatpush1.bf16.msra.mxu0 %v734
        %757 = vmatprep.subr.bf16.mxu0 0
        %758 = vmatpush1.bf16.msra.mxu0 %v735
        %759 = vmatprep.subr.bf16.mxu0 0
        %760 = vmatpush1.bf16.msra.mxu0 %v736
        %761 = vmatprep.subr.bf16.mxu0 0
        %762 = vmatpush1.bf16.msra.mxu0 0
        %763 = vmatprep.subr.bf16.mxu0 0
        %764 = vmatpush1.bf16.msra.mxu0 0
        %765 = vmatprep.subr.bf16.mxu0 0
        %766 = vmatpush1.bf16.msra.mxu0 0
        %767 = vmatprep.subr.bf16.mxu0 0
        %768 = vmatpush1.bf16.msra.mxu0 0
        %769 = vmatprep.subr.bf16.mxu0 0
        %770 = vmatpush1.bf16.msra.mxu0 0
        %771 = vmatprep.subr.bf16.mxu0 0
        %772 = vmatpush1.bf16.msra.mxu0 0
        %773 = vmatprep.subr.bf16.mxu0 0
        %774 = vmatpush1.bf16.msra.mxu0 0
        %775 = vmatprep.subr.bf16.mxu0 0
        %776 = vmatpush1.bf16.msra.mxu0 0
        %777 = vmatprep.mubr.bf16.mxu0 0
        %778 = vmatmul.mubr.bf16.gmra.mrb[0].mxu0 %v675
        %v779 = vpop.f32.mrb[0].mxu0
        %v780 = vadd.f32 %v696, %v779
        %v781 = vpop.f32.mrb[0].mxu0
        %v782 = vpop.f32.mrb[0].mxu0
        %v783 = vpop.f32.mrb[0].mxu0
        %784 = vdwg.mxu0
        %vm785 = vcmp.gt.f32.partialorder %v780, 0.0
        %v786 = vmul.f32 %v780, 0.2
        %v787 = vsel %vm785, %v780, %v786
        %v788 = vpack.c.bf16 %v787, %v787
        %s789 = scalar_lea.vmem [#allocation5], 320
        %v790 = vld [vmem:[%s789] sm:$0xf]
        %v791 = vld [vmem:[%s789 + $0x4] sm:$0xf]
        %v792 = vld [vmem:[%s789 + $0x8] sm:$0xf]
        %v793 = vld [vmem:[%s789 + $0xc] sm:$0xf]
        %v794 = vld [vmem:[%s789 + $0x10] sm:$0xf]
        %v795 = vld [vmem:[%s789 + $0x14] sm:$0xf]
        %v796 = vld [vmem:[%s789 + $0x18] sm:$0xf]
        %v797 = vld [vmem:[%s789 + $0x1c] sm:$0xf]
        %v798 = vld [vmem:[%s789 + $0x20] sm:$0xf]
        %v799 = vld [vmem:[%s789 + $0x24] sm:$0xf]
        %v800 = vld [vmem:[%s789 + $0x28] sm:$0xf]
        %v801 = vld [vmem:[%s789 + $0x2c] sm:$0xf]
        %v802 = vld [vmem:[%s789 + $0x30] sm:$0xf]
        %v803 = vld [vmem:[%s789 + $0x34] sm:$0xf]
        %v804 = vld [vmem:[%s789 + $0x38] sm:$0xf]
        %v805 = vld [vmem:[%s789 + $0x3c] sm:$0xf]
        %v806 = vlaneseq
        %v807 = vshrl.u32 %v806, 7
        %v808 = vsub.s32 5, %v807
        %v809 = vrot.slane %v223, %v808
        %v826 = vunpack.c.l.b16 %v790
        %v827 = vunpack.c.l.b16 %v791
        %v828 = vunpack.c.l.b16 %v792
        %v829 = vunpack.c.l.b16 %v793
        %v830 = vunpack.c.l.b16 %v794
        %v831 = vunpack.c.l.b16 %v795
        %v832 = vunpack.c.l.b16 %v796
        %v833 = vunpack.c.l.b16 %v797
        %v834 = vunpack.c.l.b16 %v798
        %v835 = vunpack.c.l.b16 %v799
        %v836 = vunpack.c.l.b16 %v800
        %v837 = vunpack.c.l.b16 %v801
        %v838 = vunpack.c.l.b16 %v802
        %v839 = vunpack.c.l.b16 %v803
        %v840 = vunpack.c.l.b16 %v804
        %v841 = vunpack.c.l.b16 %v805
        %v842 = vpack.c.b16 %v827, %v826
        %v843 = vpack.c.b16 %v829, %v828
        %v844 = vpack.c.b16 %v831, %v830
        %v845 = vpack.c.b16 %v833, %v832
        %v846 = vpack.c.b16 %v835, %v834
        %v847 = vpack.c.b16 %v837, %v836
        %v848 = vpack.c.b16 %v839, %v838
        %v849 = vpack.c.b16 %v841, %v840
        %858 = vmatprep.subr.bf16.mxu0 0
        %859 = vmatpush1.bf16.msra.mxu0 %v842
        %860 = vmatprep.subr.bf16.mxu0 0
        %861 = vmatpush1.bf16.msra.mxu0 %v843
        %862 = vmatprep.subr.bf16.mxu0 0
        %863 = vmatpush1.bf16.msra.mxu0 %v844
        %864 = vmatprep.subr.bf16.mxu0 0
        %865 = vmatpush1.bf16.msra.mxu0 %v845
        %866 = vmatprep.subr.bf16.mxu0 0
        %867 = vmatpush1.bf16.msra.mxu0 %v846
        %868 = vmatprep.subr.bf16.mxu0 0
        %869 = vmatpush1.bf16.msra.mxu0 %v847
        %870 = vmatprep.subr.bf16.mxu0 0
        %871 = vmatpush1.bf16.msra.mxu0 %v848
        %872 = vmatprep.subr.bf16.mxu0 0
        %873 = vmatpush1.bf16.msra.mxu0 %v849
        %874 = vmatprep.subr.bf16.mxu0 0
        %875 = vmatpush1.bf16.msra.mxu0 0
        %876 = vmatprep.subr.bf16.mxu0 0
        %877 = vmatpush1.bf16.msra.mxu0 0
        %878 = vmatprep.subr.bf16.mxu0 0
        %879 = vmatpush1.bf16.msra.mxu0 0
        %880 = vmatprep.subr.bf16.mxu0 0
        %881 = vmatpush1.bf16.msra.mxu0 0
        %882 = vmatprep.subr.bf16.mxu0 0
        %883 = vmatpush1.bf16.msra.mxu0 0
        %884 = vmatprep.subr.bf16.mxu0 0
        %885 = vmatpush1.bf16.msra.mxu0 0
        %886 = vmatprep.subr.bf16.mxu0 0
        %887 = vmatpush1.bf16.msra.mxu0 0
        %888 = vmatprep.subr.bf16.mxu0 0
        %889 = vmatpush1.bf16.msra.mxu0 0
        %890 = vmatprep.mubr.bf16.mxu0 0
        %891 = vmatmul.mubr.bf16.gmra.mrb[0].mxu0 %v788
        %v892 = vpop.f32.mrb[0].mxu0
        %v893 = vadd.f32 %v809, %v892
        %v894 = vpop.f32.mrb[0].mxu0
        %v895 = vpop.f32.mrb[0].mxu0
        %v896 = vpop.f32.mrb[0].mxu0
        %897 = vdwg.mxu0
        %vm898 = vcmp.gt.f32.partialorder %v893, 0.0
        %v899 = vmul.f32 %v893, 0.2
        %v900 = vsel %vm898, %v893, %v899
        %v901 = vpack.c.bf16 %v900, %v900
        %s902 = scalar_lea.vmem [#allocation5], 384
        %v903 = vld [vmem:[%s902] sm:$0xf]
        %v904 = vld [vmem:[%s902 + $0x4] sm:$0xf]
        %v905 = vld [vmem:[%s902 + $0x8] sm:$0xf]
        %v906 = vld [vmem:[%s902 + $0xc] sm:$0xf]
        %v907 = vld [vmem:[%s902 + $0x10] sm:$0xf]
        %v908 = vld [vmem:[%s902 + $0x14] sm:$0xf]
        %v909 = vld [vmem:[%s902 + $0x18] sm:$0xf]
        %v910 = vld [vmem:[%s902 + $0x1c] sm:$0xf]
        %v911 = vld [vmem:[%s902 + $0x20] sm:$0xf]
        %v912 = vld [vmem:[%s902 + $0x24] sm:$0xf]
        %v913 = vld [vmem:[%s902 + $0x28] sm:$0xf]
        %v914 = vld [vmem:[%s902 + $0x2c] sm:$0xf]
        %v915 = vld [vmem:[%s902 + $0x30] sm:$0xf]
        %v916 = vld [vmem:[%s902 + $0x34] sm:$0xf]
        %v917 = vld [vmem:[%s902 + $0x38] sm:$0xf]
        %v918 = vld [vmem:[%s902 + $0x3c] sm:$0xf]
        %v919 = vlaneseq
        %v920 = vshrl.u32 %v919, 7
        %v921 = vsub.s32 6, %v920
        %v922 = vrot.slane %v223, %v921
        %v939 = vunpack.c.l.b16 %v903
        %v940 = vunpack.c.l.b16 %v904
        %v941 = vunpack.c.l.b16 %v905
        %v942 = vunpack.c.l.b16 %v906
        %v943 = vunpack.c.l.b16 %v907
        %v944 = vunpack.c.l.b16 %v908
        %v945 = vunpack.c.l.b16 %v909
        %v946 = vunpack.c.l.b16 %v910
        %v947 = vunpack.c.l.b16 %v911
        %v948 = vunpack.c.l.b16 %v912
        %v949 = vunpack.c.l.b16 %v913
        %v950 = vunpack.c.l.b16 %v914
        %v951 = vunpack.c.l.b16 %v915
        %v952 = vunpack.c.l.b16 %v916
        %v953 = vunpack.c.l.b16 %v917
        %v954 = vunpack.c.l.b16 %v918
        %v955 = vpack.c.b16 %v940, %v939
        %v956 = vpack.c.b16 %v942, %v941
        %v957 = vpack.c.b16 %v944, %v943
        %v958 = vpack.c.b16 %v946, %v945
        %v959 = vpack.c.b16 %v948, %v947
        %v960 = vpack.c.b16 %v950, %v949
        %v961 = vpack.c.b16 %v952, %v951
        %v962 = vpack.c.b16 %v954, %v953
        %971 = vmatprep.subr.bf16.mxu0 0
        %972 = vmatpush1.bf16.msra.mxu0 %v955
        %973 = vmatprep.subr.bf16.mxu0 0
        %974 = vmatpush1.bf16.msra.mxu0 %v956
        %975 = vmatprep.subr.bf16.mxu0 0
        %976 = vmatpush1.bf16.msra.mxu0 %v957
        %977 = vmatprep.subr.bf16.mxu0 0
        %978 = vmatpush1.bf16.msra.mxu0 %v958
        %979 = vmatprep.subr.bf16.mxu0 0
        %980 = vmatpush1.bf16.msra.mxu0 %v959
        %981 = vmatprep.subr.bf16.mxu0 0
        %982 = vmatpush1.bf16.msra.mxu0 %v960
        %983 = vmatprep.subr.bf16.mxu0 0
        %984 = vmatpush1.bf16.msra.mxu0 %v961
        %985 = vmatprep.subr.bf16.mxu0 0
        %986 = vmatpush1.bf16.msra.mxu0 %v962
        %987 = vmatprep.subr.bf16.mxu0 0
        %988 = vmatpush1.bf16.msra.mxu0 0
        %989 = vmatprep.subr.bf16.mxu0 0
        %990 = vmatpush1.bf16.msra.mxu0 0
        %991 = vmatprep.subr.bf16.mxu0 0
        %992 = vmatpush1.bf16.msra.mxu0 0
        %993 = vmatprep.subr.bf16.mxu0 0
        %994 = vmatpush1.bf16.msra.mxu0 0
        %995 = vmatprep.subr.bf16.mxu0 0
        %996 = vmatpush1.bf16.msra.mxu0 0
        %997 = vmatprep.subr.bf16.mxu0 0
        %998 = vmatpush1.bf16.msra.mxu0 0
        %999 = vmatprep.subr.bf16.mxu0 0
        %1000 = vmatpush1.bf16.msra.mxu0 0
        %1001 = vmatprep.subr.bf16.mxu0 0
        %1002 = vmatpush1.bf16.msra.mxu0 0
        %1003 = vmatprep.mubr.bf16.mxu0 0
        %1004 = vmatmul.mubr.bf16.gmra.mrb[0].mxu0 %v901
        %v1005 = vpop.f32.mrb[0].mxu0
        %v1006 = vadd.f32 %v922, %v1005
        %v1007 = vpop.f32.mrb[0].mxu0
        %v1008 = vpop.f32.mrb[0].mxu0
        %v1009 = vpop.f32.mrb[0].mxu0
        %1010 = vdwg.mxu0
        %vm1011 = vcmp.gt.f32.partialorder %v1006, 0.0
        %v1012 = vmul.f32 %v1006, 0.2
        %v1013 = vsel %vm1011, %v1006, %v1012
        %v1014 = vpack.c.bf16 %v1013, %v1013
        %s1015 = scalar_lea.vmem [#allocation5], 448
        %v1016 = vld [vmem:[%s1015] sm:$0xf]
        %v1017 = vld [vmem:[%s1015 + $0x4] sm:$0xf]
        %v1018 = vld [vmem:[%s1015 + $0x8] sm:$0xf]
        %v1019 = vld [vmem:[%s1015 + $0xc] sm:$0xf]
        %v1020 = vld [vmem:[%s1015 + $0x10] sm:$0xf]
        %v1021 = vld [vmem:[%s1015 + $0x14] sm:$0xf]
        %v1022 = vld [vmem:[%s1015 + $0x18] sm:$0xf]
        %v1023 = vld [vmem:[%s1015 + $0x1c] sm:$0xf]
        %v1024 = vld [vmem:[%s1015 + $0x20] sm:$0xf]
        %v1025 = vld [vmem:[%s1015 + $0x24] sm:$0xf]
        %v1026 = vld [vmem:[%s1015 + $0x28] sm:$0xf]
        %v1027 = vld [vmem:[%s1015 + $0x2c] sm:$0xf]
        %v1028 = vld [vmem:[%s1015 + $0x30] sm:$0xf]
        %v1029 = vld [vmem:[%s1015 + $0x34] sm:$0xf]
        %v1030 = vld [vmem:[%s1015 + $0x38] sm:$0xf]
        %v1031 = vld [vmem:[%s1015 + $0x3c] sm:$0xf]
        %v1032 = vlaneseq
        %v1033 = vshrl.u32 %v1032, 7
        %v1034 = vsub.s32 7, %v1033
        %v1035 = vrot.slane %v223, %v1034
        %v1052 = vunpack.c.l.b16 %v1016
        %v1053 = vunpack.c.l.b16 %v1017
        %v1054 = vunpack.c.l.b16 %v1018
        %v1055 = vunpack.c.l.b16 %v1019
        %v1056 = vunpack.c.l.b16 %v1020
        %v1057 = vunpack.c.l.b16 %v1021
        %v1058 = vunpack.c.l.b16 %v1022
        %v1059 = vunpack.c.l.b16 %v1023
        %v1060 = vunpack.c.l.b16 %v1024
        %v1061 = vunpack.c.l.b16 %v1025
        %v1062 = vunpack.c.l.b16 %v1026
        %v1063 = vunpack.c.l.b16 %v1027
        %v1064 = vunpack.c.l.b16 %v1028
        %v1065 = vunpack.c.l.b16 %v1029
        %v1066 = vunpack.c.l.b16 %v1030
        %v1067 = vunpack.c.l.b16 %v1031
        %v1068 = vpack.c.b16 %v1053, %v1052
        %v1069 = vpack.c.b16 %v1055, %v1054
        %v1070 = vpack.c.b16 %v1057, %v1056
        %v1071 = vpack.c.b16 %v1059, %v1058
        %v1072 = vpack.c.b16 %v1061, %v1060
        %v1073 = vpack.c.b16 %v1063, %v1062
        %v1074 = vpack.c.b16 %v1065, %v1064
        %v1075 = vpack.c.b16 %v1067, %v1066
        %1084 = vmatprep.subr.bf16.mxu0 0
        %1085 = vmatpush1.bf16.msra.mxu0 %v1068
        %1086 = vmatprep.subr.bf16.mxu0 0
        %1087 = vmatpush1.bf16.msra.mxu0 %v1069
        %1088 = vmatprep.subr.bf16.mxu0 0
        %1089 = vmatpush1.bf16.msra.mxu0 %v1070
        %1090 = vmatprep.subr.bf16.mxu0 0
        %1091 = vmatpush1.bf16.msra.mxu0 %v1071
        %1092 = vmatprep.subr.bf16.mxu0 0
        %1093 = vmatpush1.bf16.msra.mxu0 %v1072
        %1094 = vmatprep.subr.bf16.mxu0 0
        %1095 = vmatpush1.bf16.msra.mxu0 %v1073
        %1096 = vmatprep.subr.bf16.mxu0 0
        %1097 = vmatpush1.bf16.msra.mxu0 %v1074
        %1098 = vmatprep.subr.bf16.mxu0 0
        %1099 = vmatpush1.bf16.msra.mxu0 %v1075
        %1100 = vmatprep.subr.bf16.mxu0 0
        %1101 = vmatpush1.bf16.msra.mxu0 0
        %1102 = vmatprep.subr.bf16.mxu0 0
        %1103 = vmatpush1.bf16.msra.mxu0 0
        %1104 = vmatprep.subr.bf16.mxu0 0
        %1105 = vmatpush1.bf16.msra.mxu0 0
        %1106 = vmatprep.subr.bf16.mxu0 0
        %1107 = vmatpush1.bf16.msra.mxu0 0
        %1108 = vmatprep.subr.bf16.mxu0 0
        %1109 = vmatpush1.bf16.msra.mxu0 0
        %1110 = vmatprep.subr.bf16.mxu0 0
        %1111 = vmatpush1.bf16.msra.mxu0 0
        %1112 = vmatprep.subr.bf16.mxu0 0
        %1113 = vmatpush1.bf16.msra.mxu0 0
        %1114 = vmatprep.subr.bf16.mxu0 0
        %1115 = vmatpush1.bf16.msra.mxu0 0
        %1116 = vmatprep.mubr.bf16.mxu0 0
        %1117 = vmatmul.mubr.bf16.gmra.mrb[0].mxu0 %v1014
        %v1118 = vpop.f32.mrb[0].mxu0
        %v1119 = vadd.f32 %v1035, %v1118
        %v1120 = vpop.f32.mrb[0].mxu0
        %v1121 = vpop.f32.mrb[0].mxu0
        %v1122 = vpop.f32.mrb[0].mxu0
        %1123 = vdwg.mxu0
        %vm1124 = vcmp.gt.f32.partialorder %v1119, 0.0
        %v1125 = vmul.f32 %v1119, 0.2
        %v1126 = vsel %vm1124, %v1119, %v1125
        %1127 = vst [vmem:[%s212] sm:$0xff] %v1126
        %s1128 = sand.u32 %s97, 1
        %s1129 = scalar_lea.sflag [#allocation4], %s1128
        %s1130 = sand.u32 %s97, 1
        %s1131 = smul.addr %s1130, 8
        %s1132 = scalar_lea.vmem [#allocation8], %s1131
        // Predicated region
        $region45: #{tpu_custom_call.1} parent=31 // pred_check
          %p1133 = pneg %p107
        $region46: #{tpu_custom_call.1} parent=31 // pred_check_branch
          %1135 = sbr.rel (%p1133) target = $region48
        $region47: #{tpu_custom_call.1} parent=31 // pred_region
          %s1137 = ssub.s32 128, 128
          %1138 = vsyncadd %s1129, %s1137
          %s1139 = smul.addr %s21, 128
          %s1140 = scalar_lea.hbm %s3, %s1139
          %s1142 = sshll.u32 %s1132, 4
          %s1143 = int_to_ptr.vmem [resolvable:$true] %s1142
          %1145 = dma.vmem_to_hbm [thread:$0]  %s1143, 128, %s1140, %s1129
        $region48: #{tpu_custom_call.1} parent=31 // pred_fallthru
          _
      $region32: #{tpu_custom_call.1} parent=5 // pred_fallthru
        _
      %p1146 = scmp.le.s32.totalorder 2, %s16
      // Predicated region
      $region49: #{tpu_custom_call.1} parent=5 // pred_check
        %p1147 = pneg %p1146
      $region50: #{tpu_custom_call.1} parent=5 // pred_check_branch
        %1149 = sbr.rel (%p1147) target = $region52
      $region51: #{tpu_custom_call.1} parent=5 // pred_region
        %s1150 = ssub.s32 %s16, 2
        // Predicated region
        $region53: #{tpu_custom_call.1} parent=51 // pred_check
          %p1151 = pneg %p113
        $region54: #{tpu_custom_call.1} parent=51 // pred_check_branch
          %1153 = sbr.rel (%p1151) target = $region56
        $region55: #{tpu_custom_call.1} parent=51 // pred_region
          %s1154 = sand.u32 %s98, 1
          %s1155 = scalar_lea.sflag [#allocation4], %s1154
          %s1156 = sand.u32 %s98, 1
          %s1157 = smul.addr %s1156, 8
          %s1158 = scalar_lea.vmem [#allocation8], %s1157
          %1159 = dma.done %s1155, 128
        $region56: #{tpu_custom_call.1} parent=51 // pred_fallthru
          _
      $region52: #{tpu_custom_call.1} parent=5 // pred_fallthru
        _
    $region6: #{tpu_custom_call.1} parent=1 // loop_footer
      %s20 = sadd.s32 1, %s16
    $region7: #{tpu_custom_call.1} parent=1 // loop_footer_branch
      %15 = sbr.rel target = $region3
    $region8: #{tpu_custom_call.1} parent=1 // loop_exit
      _
    %1160 = vsyncpa [#allocation3], 1
    %s1161 = scalar_lea.sflag [#allocation3], 1
    %1162 = vsyncpa %s1161, 1
    %1163 = vsyncpa [#allocation6], 1
    %1164 = vsyncpa [#allocation4], 1
    %s1165 = scalar_lea.sflag [#allocation4], 1
    %1166 = vsyncpa %s1165, 1

</llo_original>
